<compile_context>
chip_gen: v7x
topology: tpu7x:2x2x1
jax: 0.10.0
libtpu: 0.0.40
codegen_flags: <defaults>
</compile_context>

<pallas_src>
import jax
import jax.numpy as jnp
from jax.experimental import pallas as pl
from jax.experimental.pallas import tpu as pltpu


_DEFAULT_TILE_T = 512         # lane-axis tile width (multiple of 128)
_SMALL_PARAM_BYTES = 1 << 20  # below this, plain XLA beats a pallas_call


def _make_scale_kernel(scale: float, out_dtype):
    """Elementwise VPU kernel: out = raw * scale, scale baked in as a literal."""
    scale = float(scale)  # keep as Python float -> jaxpr literal, not a captured array

    def kernel(raw_ref, out_ref):
        out_ref[...] = (raw_ref[...].astype(jnp.float32) * scale).astype(out_dtype)

    return kernel


def _pick_lane_tile(t: int, max_tile: int) -> int:
    """Largest tile <= max_tile that is a multiple of 128 and divides t.

    If t itself is not a multiple of 128, fall back to a full-extent block on
    that axis (exempt from the (8,128) divisibility rule).
    """
    if t % 128 != 0:
        return t
    tile = min(t, max_tile)
    tile -= tile % 128
    while t % tile != 0:
        tile -= 128
    return tile


def noise_parameters_forward(
    x,
    raw_params,
    scale,
    *,
    tile_t: int = _DEFAULT_TILE_T,
    force_pallas: bool = False,
):
    """Replicates NoiseParameters.forward(x) -> (params, None).

    x is accepted (and ignored) to mirror the PyTorch signature.
    raw_params: the stored standard-normal draw, shape == param_shape.
    scale: python float; the module's init-time scale, folded into the kernel.
    """
    del x  # forward ignores its input, exactly like the PyTorch module

    nbytes = raw_params.size * raw_params.dtype.itemsize
    if not force_pallas and nbytes < _SMALL_PARAM_BYTES:
        # Tiny parameter tensors: pallas launch/DMA overhead dominates; do the
        # scale as a plain XLA op instead.
        scaled = raw_params.astype(jnp.float32) * jnp.float32(scale)
        return scaled.astype(raw_params.dtype), None

    shape = raw_params.shape
    ndim = raw_params.ndim
    t = shape[-1]
    tile = _pick_lane_tile(t, tile_t)
    grid = (t // tile,)
    block_shape = tuple(shape[:-1]) + (tile,)

    def index_map(i):
        return (0,) * (ndim - 1) + (i,)

    params = pl.pallas_call(
        _make_scale_kernel(scale, raw_params.dtype),
        out_shape=jax.ShapeDtypeStruct(shape, raw_params.dtype),
        grid=grid,
        in_specs=[pl.BlockSpec(block_shape, index_map)],
        out_specs=pl.BlockSpec(block_shape, index_map),
        compiler_params=pltpu.CompilerParams(
            dimension_semantics=("parallel",),
        ),
    )(raw_params)

    return params, None


if __name__ == "__main__":
    key = jax.random.PRNGKey(0)
    k_param, k_x = jax.random.split(key)

    # param_shape = (channels, frames); frames chosen so the tiled grid has
    # more than one step (1024 / 512 = 2 tiles) while staying tiny (32 KiB).
    param_shape = (8, 1024)
    scale = 0.002
    raw_params = jax.random.normal(k_param, param_shape, dtype=jnp.float32)

    # Example input (ignored by forward), e.g. [batch, channels, time]
    x = jax.random.normal(k_x, (2, 4, 16), dtype=jnp.float32)

    params_out, none_out = noise_parameters_forward(
        x, raw_params, scale, force_pallas=True
    )
    params_out = jax.block_until_ready(params_out)

    # Reference check: forward must return raw_params * scale and None.
    expected = raw_params * scale
    assert none_out is None
    assert params_out.shape == param_shape
    assert params_out.dtype == raw_params.dtype
    assert jnp.allclose(params_out, expected, atol=1e-7), "mismatch vs reference"

    print("KERNEL_OK")
</pallas_src>

<mosaic_0001>
module attributes {stable_mosaic.version = 11 : i64} {
  func.func @kernel(%arg0: i32, %arg1: memref<8x512xf32, #tpu.memory_space<vmem>>, %arg2: memref<8x512xf32, #tpu.memory_space<vmem>>) attributes {dimension_semantics = [#tpu.dimension_semantics<parallel>], iteration_bounds = array<i64: 2>, scalar_prefetch = 0 : i64, scratch_operands = 0 : i64, tpu.core_type = #tpu.core_type<tc>, window_params = [{transform_indices = @transform_0, window_bounds = array<i64: 8, 512>}, {transform_indices = @transform_1, window_bounds = array<i64: 8, 512>}]} {
    %c0 = arith.constant 0 : index
    %c0_0 = arith.constant 0 : index
    %0 = vector.load %arg1[%c0, %c0_0] : memref<8x512xf32, #tpu.memory_space<vmem>>, vector<8x512xf32>
    %cst = arith.constant 2.000000e-03 : f32
    %1 = vector.broadcast %cst : f32 to vector<8x512xf32>
    %2 = arith.mulf %0, %1 : vector<8x512xf32>
    %c0_1 = arith.constant 0 : index
    %c0_2 = arith.constant 0 : index
    %3 = vector.load %arg2[%c0_1, %c0_2] : memref<8x512xf32, #tpu.memory_space<vmem>>, vector<8x512xf32>
    tpu.vector_store %arg2[%c0_1, %c0_2], %2 {strides = array<i32>} : memref<8x512xf32, #tpu.memory_space<vmem>>, vector<8x512xf32>,
    return
  }
  func.func @transform_0(%arg0: i32) -> (i32, i32) {
    %c0_i32 = arith.constant 0 : i32
    %c0_i32_0 = arith.constant 0 : i32
    return %c0_i32, %arg0 : i32, i32
  }
  func.func @transform_1(%arg0: i32) -> (i32, i32) {
    %c0_i32 = arith.constant 0 : i32
    %c0_i32_0 = arith.constant 0 : i32
    return %c0_i32, %arg0 : i32, i32
  }
}

</mosaic_0001>

<llo_original>
// kernel: tpu_custom_call.1
$region0: #{tpu_custom_call.1}
  #allocation0 [shape = 'u32[]', space=smem, size = 0x4, offset = 0x4, fixed_abs, tag = 'smem constant byte address 0x4 - core index']
  #allocation1 [shape = 'u32[144,128]{1,0:T(1,128)}', space=vmem, size = 0x12000, scoped, tag = 'internal scratch']
  %s0 = inlined_call_operand.hbm [shape: f32[8,1024], index: 0, kind: input, shape index: {}]
  %s1 = inlined_call_operand.hbm [shape: f32[8,1024], index: 1, kind: output, shape index: {}]
  %s2 = sld [smem:[#allocation0]]
  $region41: #{tpu_custom_call.1} parent=0
    _
  %s4 = ssub.s32 1, %s2
  %s5 = scalar_select 0, %s4, %s2
  $region1: #{tpu_custom_call.1} parent=0
    #allocation2 [shape = 'u8[32768]{0}', space=vmem, size = 0x8000, scoped, tag = 'input window, operand 0']
    #allocation3 [shape = 's32[2]{0}', space=sflag, size = 0x8, scoped, tag = 'scoped memory for tpu_custom_call.1']
    #allocation4 [shape = 's32[2]{0}', space=sflag, size = 0x8, scoped, tag = 'scoped memory for tpu_custom_call.1']
    #allocation5 [shape = 'u8[32768]{0}', space=vmem, size = 0x8000, scoped, tag = 'output window, operand 0']
    %6 = vsyncpa [#allocation3], 0
    %s7 = scalar_lea.sflag [#allocation3], 1
    %8 = vsyncpa %s7, 0
    %9 = vsyncpa [#allocation4], 0
    %s10 = scalar_lea.sflag [#allocation4], 1
    %11 = vsyncpa %s10, 0
    loop: start=0, step=1, limit=4
    $region2: #{tpu_custom_call.1} parent=1 // loop_pre_header
      _
    $region3: #{tpu_custom_call.1} parent=1 // loop_header
      %s13 = sphi 0, %s17
      %p14 = scmp.ge.s32.totalorder %s13, 4
      %s23 = sphi 0, %s25
      %s26 = sphi 0, %s23
      %s27 = sphi 0, %s26
      %s43 = sphi 0, %s27
      %s49 = sphi 0, %s51
      %s52 = sphi 0, %s49
      %s53 = sphi 0, %s52
      %s69 = sphi 0, %s53
    $region4: #{tpu_custom_call.1} parent=1 // loop_header_branch
      %16 = sbr.rel (%p14) target = $region8
    $region5: #{tpu_custom_call.1} parent=1 // loop_body
      %s18 = ssub.s32 %s13, 1
      %s19 = ssub.s32 %s13, 2
      %s20 = sadd.s32 %s13, 1
      %s21 = ssub.s32 %s13, %s20
      %p22 = scmp.eq.s32.totalorder %s21, 0
      %s24 = sadd.s32 %s23, 1
      %s25 = scalar_select %p22, %s23, %s24
      %p28 = pneg %p22
      %p29 = scmp.eq.s32.totalorder %s13, 1
      %p30 = por %p28, %p29
      %p31 = scmp.ne.s32.totalorder %s23, %s26
      %p32 = scmp.eq.s32.totalorder %s13, 0
      %p33 = por %p31, %p32
      %p34 = scmp.ne.s32.totalorder %s23, %s26
      %p35 = scmp.eq.s32.totalorder %s18, 1
      %p36 = por %p34, %p35
      %p37 = scmp.ne.s32.totalorder %s26, %s27
      %p38 = scmp.eq.s32.totalorder %s18, 0
      %p39 = por %p37, %p38
      %p40 = scmp.ne.s32.totalorder %s26, %s27
      %p41 = scmp.eq.s32.totalorder %s19, 1
      %p42 = por %p40, %p41
      %p44 = scmp.ne.s32.totalorder %s27, %s43
      %p45 = scmp.eq.s32.totalorder %s19, 0
      %p46 = por %p44, %p45
      %s47 = ssub.s32 %s13, %s20
      %p48 = scmp.eq.s32.totalorder %s47, 0
      %s50 = sadd.s32 %s49, 1
      %s51 = scalar_select %p48, %s49, %s50
      %p54 = pneg %p48
      %p55 = scmp.eq.s32.totalorder %s13, 1
      %p56 = por %p54, %p55
      %p57 = scmp.ne.s32.totalorder %s49, %s52
      %p58 = scmp.eq.s32.totalorder %s13, 0
      %p59 = por %p57, %p58
      %p60 = scmp.ne.s32.totalorder %s49, %s52
      %p61 = scmp.eq.s32.totalorder %s18, 1
      %p62 = por %p60, %p61
      %p63 = scmp.ne.s32.totalorder %s52, %s53
      %p64 = scmp.eq.s32.totalorder %s18, 0
      %p65 = por %p63, %p64
      %p66 = scmp.ne.s32.totalorder %s52, %s53
      %p67 = scmp.eq.s32.totalorder %s19, 1
      %p68 = por %p66, %p67
      %p70 = scmp.ne.s32.totalorder %s53, %s69
      %p71 = scmp.eq.s32.totalorder %s19, 0
      %p72 = por %p70, %p71
      %p73 = scmp.le.s32.totalorder 1, %s13
      %p74 = scmp.lt.s32.totalorder %s13, 3
      %p75 = pnand %p73, %p74
      %p76 = pneg %p75
      // Predicated region
      $region9: #{tpu_custom_call.1} parent=5 // pred_check
        _
      $region10: #{tpu_custom_call.1} parent=5 // pred_check_branch
        %78 = sbr.rel (%p75) target = $region12
      $region11: #{tpu_custom_call.1} parent=5 // pred_region
        %s79 = ssub.s32 %s13, 1
      $region12: #{tpu_custom_call.1} parent=5 // pred_fallthru
        _
      %p80 = scmp.lt.s32.totalorder %s13, 2
      // Predicated region
      $region13: #{tpu_custom_call.1} parent=5 // pred_check
        %p81 = pneg %p80
      $region14: #{tpu_custom_call.1} parent=5 // pred_check_branch
        %83 = sbr.rel (%p81) target = $region16
      $region15: #{tpu_custom_call.1} parent=5 // pred_region
        // Predicated region
        $region17: #{tpu_custom_call.1} parent=15 // pred_check
          %p84 = pneg %p33
        $region18: #{tpu_custom_call.1} parent=15 // pred_check_branch
          %86 = sbr.rel (%p84) target = $region20
        $region19: #{tpu_custom_call.1} parent=15 // pred_region
          %s87 = sand.u32 %s23, 1
          %s88 = scalar_lea.sflag [#allocation3], %s87
          %s89 = sand.u32 %s23, 1
          %s90 = smul.addr %s89, 32
          %s91 = scalar_lea.vmem [#allocation2], %s90
          %s92 = smul.u32 4, %s13
          %s94 = ssub.s32 512, 512
          %95 = vsyncadd %s88, %s94
          %s96 = smul.addr %s92, 128
          %s97 = scalar_lea.hbm %s0, %s96
          %s99 = sshll.u32 %s91, 4
          %s100 = int_to_ptr.vmem [resolvable:$true] %s99
          %102 = dma.hbm_to_vmem [thread:$0]  %s97, 512, %s100, %s88
        $region20: #{tpu_custom_call.1} parent=15 // pred_fallthru
          _
      $region16: #{tpu_custom_call.1} parent=5 // pred_fallthru
        _
      %p103 = scmp.le.s32.totalorder 1, %s13
      %p104 = scmp.lt.s32.totalorder %s13, 3
      %p105 = pnand %p103, %p104
      %p106 = pneg %p105
      // Predicated region
      $region21: #{tpu_custom_call.1} parent=5 // pred_check
        _
      $region22: #{tpu_custom_call.1} parent=5 // pred_check_branch
        %108 = sbr.rel (%p105) target = $region24
      $region23: #{tpu_custom_call.1} parent=5 // pred_region
        %s109 = ssub.s32 %s13, 1
        %s110 = sand.u32 %s26, 1
        %s111 = scalar_lea.sflag [#allocation3], %s110
        %s112 = sand.u32 %s26, 1
        %s113 = smul.addr %s112, 32
        %s114 = scalar_lea.vmem [#allocation2], %s113
        // Predicated region
        $region25: #{tpu_custom_call.1} parent=23 // pred_check
          %p115 = pneg %p39
        $region26: #{tpu_custom_call.1} parent=23 // pred_check_branch
          %117 = sbr.rel (%p115) target = $region28
        $region27: #{tpu_custom_call.1} parent=23 // pred_region
          %118 = dma.done %s111, 512
        $region28: #{tpu_custom_call.1} parent=23 // pred_fallthru
          _
        %s119 = sand.u32 %s26, 1
        %s120 = scalar_lea.sflag [#allocation3], %s119
        %s121 = sand.u32 %s26, 1
        %s122 = smul.addr %s121, 32
        %s123 = scalar_lea.vmem [#allocation2], %s122
        %p124 = pneg %p39
        %p125 = pneg %p36
        %p126 = pneg %p65
        %p127 = pneg %p62
        %s128 = sand.u32 %s52, 1
        %s129 = scalar_lea.sflag [#allocation4], %s128
        %s130 = sand.u32 %s52, 1
        %s131 = smul.addr %s130, 32
        %s132 = scalar_lea.vmem [#allocation5], %s131
        %s133 = smul.u32 4, %s18
        %s134 = smul.u32 4, %s18
        %v135 = vld [vmem:[%s114] sm:$0xff]
        %v136 = vld [vmem:[%s114 + $0x8] sm:$0xff]
        %v137 = vld [vmem:[%s114 + $0x10] sm:$0xff]
        %v138 = vld [vmem:[%s114 + $0x18] sm:$0xff]
        %v139 = vmul.f32 %v135, 0.002
        %v140 = vmul.f32 %v136, 0.002
        %v141 = vmul.f32 %v137, 0.002
        %v142 = vmul.f32 %v138, 0.002
        %143 = vst [vmem:[%s132] sm:$0xff] %v139
        %144 = vst [vmem:[%s132 + $0x8] sm:$0xff] %v140
        %145 = vst [vmem:[%s132 + $0x10] sm:$0xff] %v141
        %146 = vst [vmem:[%s132 + $0x18] sm:$0xff] %v142
        %s147 = sand.u32 %s52, 1
        %s148 = scalar_lea.sflag [#allocation4], %s147
        %s149 = sand.u32 %s52, 1
        %s150 = smul.addr %s149, 32
        %s151 = scalar_lea.vmem [#allocation5], %s150
        // Predicated region
        $region29: #{tpu_custom_call.1} parent=23 // pred_check
          %p152 = pneg %p62
        $region30: #{tpu_custom_call.1} parent=23 // pred_check_branch
          %154 = sbr.rel (%p152) target = $region32
        $region31: #{tpu_custom_call.1} parent=23 // pred_region
          %s155 = smul.u32 4, %s18
          %s157 = ssub.s32 512, 512
          %158 = vsyncadd %s148, %s157
          %s159 = smul.addr %s155, 128
          %s160 = scalar_lea.hbm %s1, %s159
          %s162 = sshll.u32 %s151, 4
          %s163 = int_to_ptr.vmem [resolvable:$true] %s162
          %165 = dma.vmem_to_hbm [thread:$0]  %s163, 512, %s160, %s148
        $region32: #{tpu_custom_call.1} parent=23 // pred_fallthru
          _
      $region24: #{tpu_custom_call.1} parent=5 // pred_fallthru
        _
      %p166 = scmp.le.s32.totalorder 2, %s13
      // Predicated region
      $region33: #{tpu_custom_call.1} parent=5 // pred_check
        %p167 = pneg %p166
      $region34: #{tpu_custom_call.1} parent=5 // pred_check_branch
        %169 = sbr.rel (%p167) target = $region36
      $region35: #{tpu_custom_call.1} parent=5 // pred_region
        %s170 = ssub.s32 %s13, 2
        // Predicated region
        $region37: #{tpu_custom_call.1} parent=35 // pred_check
          %p171 = pneg %p68
        $region38: #{tpu_custom_call.1} parent=35 // pred_check_branch
          %173 = sbr.rel (%p171) target = $region40
        $region39: #{tpu_custom_call.1} parent=35 // pred_region
          %s174 = sand.u32 %s53, 1
          %s175 = scalar_lea.sflag [#allocation4], %s174
          %s176 = sand.u32 %s53, 1
          %s177 = smul.addr %s176, 32
          %s178 = scalar_lea.vmem [#allocation5], %s177
          %179 = dma.done %s175, 512
        $region40: #{tpu_custom_call.1} parent=35 // pred_fallthru
          _
      $region36: #{tpu_custom_call.1} parent=5 // pred_fallthru
        _
    $region6: #{tpu_custom_call.1} parent=1 // loop_footer
      %s17 = sadd.s32 1, %s13
    $region7: #{tpu_custom_call.1} parent=1 // loop_footer_branch
      %12 = sbr.rel target = $region3
    $region8: #{tpu_custom_call.1} parent=1 // loop_exit
      _
    %180 = vsyncpa [#allocation3], 1
    %s181 = scalar_lea.sflag [#allocation3], 1
    %182 = vsyncpa %s181, 1
    %183 = vsyncpa [#allocation4], 1
    %s184 = scalar_lea.sflag [#allocation4], 1
    %185 = vsyncpa %s184, 1

</llo_original>
